<compile_context>
chip_gen: v7x
topology: tpu7x:2x2x1
jax: 0.10.0
libtpu: 0.0.40
codegen_flags: <defaults>
</compile_context>

<pallas_src>
import functools

import jax
import jax.numpy as jnp
from jax.experimental import pallas as pl
from jax.experimental.pallas import tpu as pltpu


def _round_up(v, m):
    return (v + m - 1) // m * m


def _cdiv(a, b):
    return (a + b - 1) // b


def _fit_tile(dim, block, align):
    """Pick a tile <= block, aligned to `align`, that minimizes padding waste."""
    dim_a = _round_up(dim, align)
    nblocks = max(1, _cdiv(dim_a, block))
    return _round_up(_cdiv(dim_a, nblocks), align)


def _sublane(dtype):
    # Minimum sublane multiple per element width (f32 -> 8, bf16 -> 16, 8-bit -> 32).
    return {4: 8, 2: 16, 1: 32}.get(jnp.dtype(dtype).itemsize, 8)


# ---------------------------------------------------------------------------
# Kernels
# ---------------------------------------------------------------------------

def _lora_kernel(x_ref, wt_ref, z_ref, bt_ref, b_ref, o_ref, acc_ref):
    # x_ref: (tm, tk), wt_ref: (tk, tn), z_ref: (tm, r_p), bt_ref: (r_p, tn)
    # b_ref: (1, tn) f32, o_ref: (tm, tn), acc_ref: (tm, tn) f32 scratch.
    k = pl.program_id(2)

    @pl.when(k == 0)
    def _():
        # Fold the bias into the accumulator init (implicit (1,tn)->(tm,tn)
        # broadcast) so the last-K epilogue stays minimal.
        acc_ref[...] = jnp.zeros_like(acc_ref) + b_ref[...]

    acc_ref[...] += jnp.dot(x_ref[...], wt_ref[...],
                            preferred_element_type=jnp.float32)

    @pl.when(k == pl.num_programs(2) - 1)
    def _():
        # Rank expansion only on the final reduction step; `scaling` is
        # already folded into bt, z was computed once outside the kernel.
        lora = jnp.dot(z_ref[...], bt_ref[...],
                       preferred_element_type=jnp.float32)
        o_ref[...] = (acc_ref[...] + lora).astype(o_ref.dtype)


def _linear_kernel(x_ref, wt_ref, b_ref, o_ref, acc_ref):
    # passthrough path: y = x @ W.T + bias
    k = pl.program_id(2)

    @pl.when(k == 0)
    def _():
        acc_ref[...] = jnp.zeros_like(acc_ref) + b_ref[...]

    acc_ref[...] += jnp.dot(x_ref[...], wt_ref[...],
                            preferred_element_type=jnp.float32)

    @pl.when(k == pl.num_programs(2) - 1)
    def _():
        o_ref[...] = acc_ref[...].astype(o_ref.dtype)


# ---------------------------------------------------------------------------
# One-time weight preparation (cache across calls / adapter swaps)
# ---------------------------------------------------------------------------

def prepare_head_lora_params(weight, bias, lora_A, lora_B, scaling, *,
                             dtype=None, block_n=512, block_k=512):
    """Pad, transpose and scaling-fold the weights once (outside the hot path)."""
    N, K = weight.shape
    r = lora_A.shape[0]
    assert lora_B.shape == (N, r), f"lora_B shape {lora_B.shape} != {(N, r)}"
    dt = jnp.dtype(dtype) if dtype is not None else jnp.dtype(weight.dtype)

    tn = _fit_tile(N, block_n, 128)
    n_aligned = _round_up(N, 128)
    # v7x megacore: guarantee >=2 blocks along the "parallel" N axis whenever
    # possible, so decode-shaped M (a single M block) still feeds both cores.
    if n_aligned >= 256 and tn >= n_aligned:
        tn = _round_up(_cdiv(n_aligned, 2), 128)
    tk = _fit_tile(K, block_k, 128)

    N_p = _round_up(N, tn)
    K_p = _round_up(K, tk)
    r_p = _round_up(r, 128)

    # Zero padding leaves the matmul results unchanged; extra output rows/cols
    # are sliced away after the kernel.
    wt = jnp.pad(weight.astype(dt), ((0, N_p - N), (0, K_p - K))).T      # (K_p, N_p)
    at = jnp.pad(lora_A.astype(dt), ((0, r_p - r), (0, K_p - K))).T      # (K_p, r_p)
    bt = jnp.pad((jnp.asarray(scaling, weight.dtype) * lora_B).astype(dt),
                 ((0, N_p - N), (0, r_p - r))).T                         # (r_p, N_p)
    if bias is None:
        b2d = jnp.zeros((1, N_p), jnp.float32)
    else:
        b2d = jnp.pad(bias.astype(jnp.float32), (0, N_p - N)).reshape(1, N_p)

    return {"wt": wt, "at": at, "bt": bt, "b2d": b2d,
            "N": N, "K": K, "tn": tn, "tk": tk}


# ---------------------------------------------------------------------------
# Per-call hot path
# ---------------------------------------------------------------------------

@functools.partial(
    jax.jit, static_argnames=("N", "tn", "tk", "passthrough", "block_m"))
def _head_lora_call(x, wt, at, bt, b2d, *, N, tn, tk, passthrough, block_m):
    *lead, K = x.shape
    K_p, N_p = wt.shape
    r_p = at.shape[1]
    out_dt = x.dtype
    cdt = wt.dtype                     # compute dtype (matches prepared weights)

    x2d = x.reshape(-1, K)
    M = x2d.shape[0]
    tm = _fit_tile(M, block_m, _sublane(cdt))
    M_p = _round_up(M, tm)

    x_p = jnp.pad(x2d.astype(cdt), ((0, M_p - M), (0, K_p - K)))

    grid = (M_p // tm, N_p // tn, K_p // tk)

    x_spec = pl.BlockSpec((tm, tk), lambda i, j, k: (i, k))
    wt_spec = pl.BlockSpec((tk, tn), lambda i, j, k: (k, j))
    b_spec = pl.BlockSpec((1, tn), lambda i, j, k: (0, j))
    o_spec = pl.BlockSpec((tm, tn), lambda i, j, k: (i, j))
    out_shape = jax.ShapeDtypeStruct((M_p, N_p), out_dt)
    itemsize = jnp.dtype(cdt).itemsize

    compiler_params = pltpu.CompilerParams(
        dimension_semantics=("parallel", "parallel", "arbitrary"),
        vmem_limit_bytes=48 * 1024 * 1024,
    )

    if passthrough:
        y_p = pl.pallas_call(
            _linear_kernel,
            out_shape=out_shape,
            grid_spec=pltpu.PrefetchScalarGridSpec(
                num_scalar_prefetch=0,
                grid=grid,
                in_specs=[x_spec, wt_spec, b_spec],
                out_specs=o_spec,
                scratch_shapes=[pltpu.VMEM((tm, tn), jnp.float32)],
            ),
            compiler_params=compiler_params,
            cost_estimate=pl.CostEstimate(
                flops=2 * M * N * K, transcendentals=0,
                bytes_accessed=(M * K + N * K + N + M * N) * itemsize),
        )(x_p, wt, b2d)
    else:
        # Low-rank projection z = x @ A.T computed ONCE per call (tiny matmul),
        # not per N-tile / K-step inside the kernel.
        z = jnp.dot(x_p, at, preferred_element_type=jnp.float32).astype(cdt)
        z_spec = pl.BlockSpec((tm, r_p), lambda i, j, k: (i, 0))
        bt_spec = pl.BlockSpec((r_p, tn), lambda i, j, k: (0, j))
        y_p = pl.pallas_call(
            _lora_kernel,
            out_shape=out_shape,
            grid_spec=pltpu.PrefetchScalarGridSpec(
                num_scalar_prefetch=0,
                grid=grid,
                in_specs=[x_spec, wt_spec, z_spec, bt_spec, b_spec],
                out_specs=o_spec,
                scratch_shapes=[pltpu.VMEM((tm, tn), jnp.float32)],
            ),
            compiler_params=compiler_params,
            cost_estimate=pl.CostEstimate(
                flops=2 * M * N * K + 2 * M * r_p * N, transcendentals=0,
                bytes_accessed=(M * K + N * K + M * r_p + r_p * N + N + M * N)
                               * itemsize),
        )(x_p, wt, z, bt, b2d)

    return y_p[:M, :N].reshape(*lead, N).astype(out_dt)


def head_lora_linear(x, params, *, passthrough=False, block_m=512):
    """y = x @ W.T + scaling*((x @ A.T) @ B.T) + bias  (LoRA skipped if passthrough)."""
    return _head_lora_call(
        x, params["wt"], params["at"], params["bt"], params["b2d"],
        N=params["N"], tn=params["tn"], tk=params["tk"],
        passthrough=passthrough, block_m=block_m)


if __name__ == "__main__":
    # Small shapes implied by the module: a token tensor (batch, seq, hidden).
    batch, seq = 2, 8
    in_features, out_features = 32, 48
    rank, alpha = 8, 16
    scaling = alpha / rank

    key = jax.random.PRNGKey(0)
    kx, kw, kb, ka, kB = jax.random.split(key, 5)

    x = jax.random.normal(kx, (batch, seq, in_features), dtype=jnp.float32)
    weight = jax.random.normal(
        kw, (out_features, in_features), dtype=jnp.float32
    ) * (1.0 / jnp.sqrt(in_features))
    bias = jax.random.normal(kb, (out_features,), dtype=jnp.float32) * 0.1
    lora_A = jax.random.normal(
        ka, (rank, in_features), dtype=jnp.float32
    ) * (1.0 / jnp.sqrt(in_features))
    # lora_B is zero-initialized in the module; use nonzero values to exercise
    # the LoRA path numerically.
    lora_B = jax.random.normal(kB, (out_features, rank), dtype=jnp.float32) * 0.05

    # One-time weight preparation (cached across calls).
    params_b = prepare_head_lora_params(weight, bias, lora_A, lora_B, scaling)
    params_nb = prepare_head_lora_params(weight, None, lora_A, lora_B, scaling)

    # biasmode == True, default LoRA branch
    y = head_lora_linear(x, params_b)
    y = jax.block_until_ready(y)

    # passthrough == True (base linear only) + bias
    y_pt = head_lora_linear(x, params_b, passthrough=True)
    y_pt = jax.block_until_ready(y_pt)

    # biasmode == False
    y_nb = head_lora_linear(x, params_nb)
    y_nb = jax.block_until_ready(y_nb)

    # Plain-JAX references.
    base = x @ weight.T
    lora = (x @ lora_A.T) @ lora_B.T
    ref = base + scaling * lora + bias
    ref_pt = base + bias
    ref_nb = base + scaling * lora

    assert y.shape == (batch, seq, out_features)
    assert jnp.allclose(y, ref, atol=1e-4, rtol=1e-4)
    assert jnp.allclose(y_pt, ref_pt, atol=1e-4, rtol=1e-4)
    assert jnp.allclose(y_nb, ref_nb, atol=1e-4, rtol=1e-4)

    print("KERNEL_OK")
</pallas_src>

<mosaic_0001>
module attributes {stable_mosaic.version = 11 : i64} {
  func.func @_lora_kernel(%arg0: i32, %arg1: i32, %arg2: i32, %arg3: memref<16x128xf32, #tpu.memory_space<vmem>>, %arg4: memref<128x128xf32, #tpu.memory_space<vmem>>, %arg5: memref<16x128xf32, #tpu.memory_space<vmem>>, %arg6: memref<128x128xf32, #tpu.memory_space<vmem>>, %arg7: memref<1x128xf32, #tpu.memory_space<vmem>>, %arg8: memref<16x128xf32, #tpu.memory_space<vmem>>, %arg9: memref<16x128xf32, #tpu.memory_space<vmem>>) attributes {dimension_semantics = [#tpu.dimension_semantics<parallel>, #tpu.dimension_semantics<parallel>, #tpu.dimension_semantics<arbitrary>], iteration_bounds = array<i64: 1, 1, 1>, scalar_prefetch = 0 : i64, scratch_operands = 1 : i64, tpu.core_type = #tpu.core_type<tc>, window_params = [{transform_indices = @transform_0, window_bounds = array<i64: 16, 128>}, {transform_indices = @transform_1, window_bounds = array<i64: 128, 128>}, {transform_indices = @transform_2, window_bounds = array<i64: 16, 128>}, {transform_indices = @transform_3, window_bounds = array<i64: 128, 128>}, {transform_indices = @transform_4, window_bounds = array<i64: 1, 128>}, {transform_indices = @transform_5, window_bounds = array<i64: 16, 128>}]} {
    %c0_i32 = arith.constant 0 : i32
    %0 = arith.cmpi eq, %arg2, %c0_i32 : i32
    %1 = arith.extui %0 : i1 to i32
    %c0_i32_0 = arith.constant 0 : i32
    %2 = arith.cmpi ne, %1, %c0_i32_0 : i32
    scf.if %2 {
      %cst_10 = arith.constant 0.000000e+00 : f32
      %12 = vector.broadcast %cst_10 : f32 to vector<16x128xf32>
      %c0_11 = arith.constant 0 : index
      %c0_12 = arith.constant 0 : index
      %13 = vector.load %arg7[%c0_11, %c0_12] : memref<1x128xf32, #tpu.memory_space<vmem>>, vector<1x128xf32>
      %14 = vector.broadcast %13 : vector<1x128xf32> to vector<16x128xf32>
      %15 = arith.addf %12, %14 : vector<16x128xf32>
      %c0_13 = arith.constant 0 : index
      %c0_14 = arith.constant 0 : index
      %16 = vector.load %arg9[%c0_13, %c0_14] : memref<16x128xf32, #tpu.memory_space<vmem>>, vector<16x128xf32>
      tpu.vector_store %arg9[%c0_13, %c0_14], %15 {strides = array<i32>} : memref<16x128xf32, #tpu.memory_space<vmem>>, vector<16x128xf32>,
    } else {
    }
    %c0 = arith.constant 0 : index
    %c0_1 = arith.constant 0 : index
    %3 = vector.load %arg9[%c0, %c0_1] : memref<16x128xf32, #tpu.memory_space<vmem>>, vector<16x128xf32>
    %c0_2 = arith.constant 0 : index
    %c0_3 = arith.constant 0 : index
    %4 = vector.load %arg3[%c0_2, %c0_3] : memref<16x128xf32, #tpu.memory_space<vmem>>, vector<16x128xf32>
    %c0_4 = arith.constant 0 : index
    %c0_5 = arith.constant 0 : index
    %5 = vector.load %arg4[%c0_4, %c0_5] : memref<128x128xf32, #tpu.memory_space<vmem>>, vector<128x128xf32>
    %cst = arith.constant dense<0.000000e+00> : vector<16x128xf32>
    %6 = tpu.matmul %4, %5, %cst {dimension_numbers = #tpu.dot_dimension_numbers<[1], [0], [0], [1], [0, 0, 1, 1], [], []>} : vector<16x128xf32>, vector<128x128xf32>, vector<16x128xf32> -> vector<16x128xf32>
    %7 = arith.addf %3, %6 : vector<16x128xf32>
    %c0_6 = arith.constant 0 : index
    %c0_7 = arith.constant 0 : index
    %8 = vector.load %arg9[%c0_6, %c0_7] : memref<16x128xf32, #tpu.memory_space<vmem>>, vector<16x128xf32>
    tpu.vector_store %arg9[%c0_6, %c0_7], %7 {strides = array<i32>} : memref<16x128xf32, #tpu.memory_space<vmem>>, vector<16x128xf32>,
    %c0_i32_8 = arith.constant 0 : i32
    %9 = arith.cmpi eq, %arg2, %c0_i32_8 : i32
    %10 = arith.extui %9 : i1 to i32
    %c0_i32_9 = arith.constant 0 : i32
    %11 = arith.cmpi ne, %10, %c0_i32_9 : i32
    scf.if %11 {
      %c0_10 = arith.constant 0 : index
      %c0_11 = arith.constant 0 : index
      %12 = vector.load %arg5[%c0_10, %c0_11] : memref<16x128xf32, #tpu.memory_space<vmem>>, vector<16x128xf32>
      %c0_12 = arith.constant 0 : index
      %c0_13 = arith.constant 0 : index
      %13 = vector.load %arg6[%c0_12, %c0_13] : memref<128x128xf32, #tpu.memory_space<vmem>>, vector<128x128xf32>
      %cst_14 = arith.constant dense<0.000000e+00> : vector<16x128xf32>
      %14 = tpu.matmul %12, %13, %cst_14 {dimension_numbers = #tpu.dot_dimension_numbers<[1], [0], [0], [1], [0, 0, 1, 1], [], []>} : vector<16x128xf32>, vector<128x128xf32>, vector<16x128xf32> -> vector<16x128xf32>
      %c0_15 = arith.constant 0 : index
      %c0_16 = arith.constant 0 : index
      %15 = vector.load %arg9[%c0_15, %c0_16] : memref<16x128xf32, #tpu.memory_space<vmem>>, vector<16x128xf32>
      %16 = arith.addf %15, %14 : vector<16x128xf32>
      %c0_17 = arith.constant 0 : index
      %c0_18 = arith.constant 0 : index
      %17 = vector.load %arg8[%c0_17, %c0_18] : memref<16x128xf32, #tpu.memory_space<vmem>>, vector<16x128xf32>
      tpu.vector_store %arg8[%c0_17, %c0_18], %16 {strides = array<i32>} : memref<16x128xf32, #tpu.memory_space<vmem>>, vector<16x128xf32>,
    } else {
    }
    return
  }
  func.func @transform_0(%arg0: i32, %arg1: i32, %arg2: i32) -> (i32, i32) {
    %c0_i32 = arith.constant 0 : i32
    return %arg0, %arg2 : i32, i32
  }
  func.func @transform_1(%arg0: i32, %arg1: i32, %arg2: i32) -> (i32, i32) {
    %c0_i32 = arith.constant 0 : i32
    return %arg2, %arg1 : i32, i32
  }
  func.func @transform_2(%arg0: i32, %arg1: i32, %arg2: i32) -> (i32, i32) {
    %c0_i32 = arith.constant 0 : i32
    %c0_i32_0 = arith.constant 0 : i32
    return %arg0, %c0_i32 : i32, i32
  }
  func.func @transform_3(%arg0: i32, %arg1: i32, %arg2: i32) -> (i32, i32) {
    %c0_i32 = arith.constant 0 : i32
    %c0_i32_0 = arith.constant 0 : i32
    return %c0_i32, %arg1 : i32, i32
  }
  func.func @transform_4(%arg0: i32, %arg1: i32, %arg2: i32) -> (i32, i32) {
    %c0_i32 = arith.constant 0 : i32
    %c0_i32_0 = arith.constant 0 : i32
    return %c0_i32, %arg1 : i32, i32
  }
  func.func @transform_5(%arg0: i32, %arg1: i32, %arg2: i32) -> (i32, i32) {
    %c0_i32 = arith.constant 0 : i32
    return %arg0, %arg1 : i32, i32
  }
}

</mosaic_0001>

<llo_original>
// kernel: _head_lora_call.1
$region0: #{_head_lora_call.1}
  #allocation0 [shape = 'u32[]', space=smem, size = 0x4, offset = 0x4, fixed_abs, tag = 'smem constant byte address 0x4 - core index']
  #allocation1 [shape = 'u32[144,128]{1,0:T(1,128)}', space=vmem, size = 0x12000, scoped, tag = 'internal scratch']
  #allocation2 [shape = 'f32[16,128]{1,0:T(8,128)}', space=vmem, size = 0x2000, scoped, tag = 'scratch operand']
  %s0 = inlined_call_operand.vmem [shape: f32[16,128], index: 0, kind: input, shape index: {}]
  %s1 = inlined_call_operand.vmem [shape: f32[128,128], index: 1, kind: input, shape index: {}]
  %s2 = inlined_call_operand.vmem [shape: f32[16,128], index: 2, kind: input, shape index: {}]
  %s3 = inlined_call_operand.hbm [shape: f32[128,128], index: 3, kind: input, shape index: {}]
  %s4 = inlined_call_operand.vmem [shape: f32[1,128], index: 4, kind: input, shape index: {}]
  %s5 = inlined_call_operand.vmem [shape: f32[16,128], index: 5, kind: output, shape index: {}]
  %s6 = sld [smem:[#allocation0]]
  $region42: #{_head_lora_call.1} parent=0
    _
  %s8 = ssub.s32 1, %s6
  %s9 = scalar_select 0, %s8, %s6
  $region1: #{_head_lora_call.1} parent=0
    #allocation3 [shape = 'u8[65536]{0}', space=vmem, size = 0x10000, scoped, tag = 'input window, operand 3, single buffered']
    #allocation4 [shape = 's32[1]{0}', space=sflag, size = 0x4, scoped, tag = 'scoped memory for _head_lora_call.1']
    %10 = vsyncpa [#allocation4], 0
    // Predicated region
    $region2: #{_head_lora_call.1} parent=1 // pred_check
      _
    $region3: #{_head_lora_call.1} parent=1 // pred_check_branch
      %12 = sbr.rel (0) target = $region5
    $region4: #{_head_lora_call.1} parent=1 // pred_region
      _
    $region5: #{_head_lora_call.1} parent=1 // pred_fallthru
      _
    // Predicated region
    $region6: #{_head_lora_call.1} parent=1 // pred_check
      _
    $region7: #{_head_lora_call.1} parent=1 // pred_check_branch
      %14 = sbr.rel (0) target = $region9
    $region8: #{_head_lora_call.1} parent=1 // pred_region
      _
    $region9: #{_head_lora_call.1} parent=1 // pred_fallthru
      _
    // Predicated region
    $region10: #{_head_lora_call.1} parent=1 // pred_check
      _
    $region11: #{_head_lora_call.1} parent=1 // pred_check_branch
      %16 = sbr.rel (0) target = $region13
    $region12: #{_head_lora_call.1} parent=1 // pred_region
      _
    $region13: #{_head_lora_call.1} parent=1 // pred_fallthru
      _
    // Predicated region
    $region14: #{_head_lora_call.1} parent=1 // pred_check
      _
    $region15: #{_head_lora_call.1} parent=1 // pred_check_branch
      %18 = sbr.rel (0) target = $region17
    $region16: #{_head_lora_call.1} parent=1 // pred_region
      %s20 = ssub.s32 2048, 2048
      %21 = vsyncadd [#allocation4], %s20
      %s22 = sshll.u32 [#allocation3], 4
      %s23 = int_to_ptr.vmem [resolvable:$true] %s22
      %28 = dma.hbm_to_vmem [thread:$0]  %s3, 2048, %s23, [#allocation4], 128, 128, 8
    $region17: #{_head_lora_call.1} parent=1 // pred_fallthru
      _
    // Predicated region
    $region18: #{_head_lora_call.1} parent=1 // pred_check
      _
    $region19: #{_head_lora_call.1} parent=1 // pred_check_branch
      %30 = sbr.rel (0) target = $region21
    $region20: #{_head_lora_call.1} parent=1 // pred_region
      _
    $region21: #{_head_lora_call.1} parent=1 // pred_fallthru
      _
    // Predicated region
    $region22: #{_head_lora_call.1} parent=1 // pred_check
      _
    $region23: #{_head_lora_call.1} parent=1 // pred_check_branch
      %32 = sbr.rel (0) target = $region25
    $region24: #{_head_lora_call.1} parent=1 // pred_region
      %33 = dma.done [#allocation4], 2048
    $region25: #{_head_lora_call.1} parent=1 // pred_fallthru
      _
    %p34 = scmp.eq.s32.totalorder 0, 0
    // Predicated region
    $region26: #{_head_lora_call.1} parent=1 // pred_check
      %p35 = pneg %p34
    $region27: #{_head_lora_call.1} parent=1 // pred_check_branch
      %37 = sbr.rel (%p35) target = $region29
    $region28: #{_head_lora_call.1} parent=1 // pred_region
      %v38 = vld [vmem:[%s4] sm:$0x1]
      %v40 = vlaneseq
      %v41 = vshrl.u32 %v40, 7
      %v42 = vsub.s32 0, %v41
      %v43 = vrot.slane %v38, %v42
      %v45 = vadd.f32 %v43, 0.0
      %46 = vst [vmem:[#allocation2] sm:$0xff] %v45
      %47 = vst [vmem:[#allocation2 + $0x8] sm:$0xff] %v45
    $region29: #{_head_lora_call.1} parent=1 // pred_fallthru
      _
    %v48 = vld [vmem:[#allocation2] sm:$0xff]
    %v49 = vld [vmem:[#allocation2 + $0x8] sm:$0xff]
    %v50 = vld [vmem:[%s0] sm:$0xff]
    %v51 = vld [vmem:[%s0 + $0x8] sm:$0xff]
    %v52 = vld [vmem:[%s1] sm:$0xff]
    %v53 = vld [vmem:[%s1 + $0x8] sm:$0xff]
    %v54 = vld [vmem:[%s1 + $0x10] sm:$0xff]
    %v55 = vld [vmem:[%s1 + $0x18] sm:$0xff]
    %v56 = vld [vmem:[%s1 + $0x20] sm:$0xff]
    %v57 = vld [vmem:[%s1 + $0x28] sm:$0xff]
    %v58 = vld [vmem:[%s1 + $0x30] sm:$0xff]
    %v59 = vld [vmem:[%s1 + $0x38] sm:$0xff]
    %v60 = vld [vmem:[%s1 + $0x40] sm:$0xff]
    %v61 = vld [vmem:[%s1 + $0x48] sm:$0xff]
    %v62 = vld [vmem:[%s1 + $0x50] sm:$0xff]
    %v63 = vld [vmem:[%s1 + $0x58] sm:$0xff]
    %v64 = vld [vmem:[%s1 + $0x60] sm:$0xff]
    %v65 = vld [vmem:[%s1 + $0x68] sm:$0xff]
    %v66 = vld [vmem:[%s1 + $0x70] sm:$0xff]
    %v67 = vld [vmem:[%s1 + $0x78] sm:$0xff]
    %68 = vmatprep.subr.mxu0 0.0
    %69 = vmatpush1.msra.mxu0 %v52
    %70 = vmatprep.subr.mxu0 0.0
    %71 = vmatpush1.msra.mxu0 %v53
    %72 = vmatprep.subr.mxu0 0.0
    %73 = vmatpush1.msra.mxu0 %v54
    %74 = vmatprep.subr.mxu0 0.0
    %75 = vmatpush1.msra.mxu0 %v55
    %76 = vmatprep.subr.mxu0 0.0
    %77 = vmatpush1.msra.mxu0 %v56
    %78 = vmatprep.subr.mxu0 0.0
    %79 = vmatpush1.msra.mxu0 %v57
    %80 = vmatprep.subr.mxu0 0.0
    %81 = vmatpush1.msra.mxu0 %v58
    %82 = vmatprep.subr.mxu0 0.0
    %83 = vmatpush1.msra.mxu0 %v59
    %84 = vmatprep.subr.mxu0 0.0
    %85 = vmatpush1.msra.mxu0 %v60
    %86 = vmatprep.subr.mxu0 0.0
    %87 = vmatpush1.msra.mxu0 %v61
    %88 = vmatprep.subr.mxu0 0.0
    %89 = vmatpush1.msra.mxu0 %v62
    %90 = vmatprep.subr.mxu0 0.0
    %91 = vmatpush1.msra.mxu0 %v63
    %92 = vmatprep.subr.mxu0 0.0
    %93 = vmatpush1.msra.mxu0 %v64
    %94 = vmatprep.subr.mxu0 0.0
    %95 = vmatpush1.msra.mxu0 %v65
    %96 = vmatprep.subr.mxu0 0.0
    %97 = vmatpush1.msra.mxu0 %v66
    %98 = vmatprep.subr.mxu0 0.0
    %99 = vmatpush1.msra.mxu0 %v67
    %100 = vmatprep.subr.mxu0 0.0
    %101 = vmatpush1.msra.mxu0 0.0
    %102 = vmatprep.subr.mxu0 0.0
    %103 = vmatpush1.msra.mxu0 0.0
    %104 = vmatprep.subr.mxu0 0.0
    %105 = vmatpush1.msra.mxu0 0.0
    %106 = vmatprep.subr.mxu0 0.0
    %107 = vmatpush1.msra.mxu0 0.0
    %108 = vmatprep.subr.mxu0 0.0
    %109 = vmatpush1.msra.mxu0 0.0
    %110 = vmatprep.subr.mxu0 0.0
    %111 = vmatpush1.msra.mxu0 0.0
    %112 = vmatprep.subr.mxu0 0.0
    %113 = vmatpush1.msra.mxu0 0.0
    %114 = vmatprep.subr.mxu0 0.0
    %115 = vmatpush1.msra.mxu0 0.0
    %116 = vmatprep.subr.mxu0 0.0
    %117 = vmatpush1.msra.mxu0 0.0
    %118 = vmatprep.subr.mxu0 0.0
    %119 = vmatpush1.msra.mxu0 0.0
    %120 = vmatprep.subr.mxu0 0.0
    %121 = vmatpush1.msra.mxu0 0.0
    %122 = vmatprep.subr.mxu0 0.0
    %123 = vmatpush1.msra.mxu0 0.0
    %124 = vmatprep.subr.mxu0 0.0
    %125 = vmatpush1.msra.mxu0 0.0
    %126 = vmatprep.subr.mxu0 0.0
    %127 = vmatpush1.msra.mxu0 0.0
    %128 = vmatprep.subr.mxu0 0.0
    %129 = vmatpush1.msra.mxu0 0.0
    %130 = vmatprep.subr.mxu0 0.0
    %131 = vmatpush1.msra.mxu0 0.0
    %132 = vmatprep.mubr.f32.mxu0 0.0
    %133 = vmatmul.mubr.f32.gmra.mrb[0].mxu0 %v50
    %v134 = vpop.f32.mrb[0].mxu0
    %v135 = vadd.f32 0.0, %v134
    %v136 = vpop.f32.mrb[0].mxu0
    %137 = vmatprep.mubr.f32.mxu0 0.0
    %138 = vmatmul.mubr.f32.gmra.mrb[0].mxu0 %v51
    %v139 = vpop.f32.mrb[0].mxu0
    %v140 = vadd.f32 0.0, %v139
    %v141 = vpop.f32.mrb[0].mxu0
    %142 = vdwg.mxu0
    %v143 = vadd.f32 %v48, %v135
    %v144 = vadd.f32 %v49, %v140
    %145 = vst [vmem:[#allocation2] sm:$0xff] %v143
    %146 = vst [vmem:[#allocation2 + $0x8] sm:$0xff] %v144
    // Predicated region
    $region30: #{_head_lora_call.1} parent=1 // pred_check
      %p147 = pneg %p34
    $region31: #{_head_lora_call.1} parent=1 // pred_check_branch
      %149 = sbr.rel (%p147) target = $region33
    $region32: #{_head_lora_call.1} parent=1 // pred_region
      %v150 = vld [vmem:[%s2] sm:$0xff]
      %v151 = vld [vmem:[%s2 + $0x8] sm:$0xff]
      %v152 = vld [vmem:[#allocation3] sm:$0xff]
      %v153 = vld [vmem:[#allocation3 + $0x8] sm:$0xff]
      %v154 = vld [vmem:[#allocation3 + $0x10] sm:$0xff]
      %v155 = vld [vmem:[#allocation3 + $0x18] sm:$0xff]
      %v156 = vld [vmem:[#allocation3 + $0x20] sm:$0xff]
      %v157 = vld [vmem:[#allocation3 + $0x28] sm:$0xff]
      %v158 = vld [vmem:[#allocation3 + $0x30] sm:$0xff]
      %v159 = vld [vmem:[#allocation3 + $0x38] sm:$0xff]
      %v160 = vld [vmem:[#allocation3 + $0x40] sm:$0xff]
      %v161 = vld [vmem:[#allocation3 + $0x48] sm:$0xff]
      %v162 = vld [vmem:[#allocation3 + $0x50] sm:$0xff]
      %v163 = vld [vmem:[#allocation3 + $0x58] sm:$0xff]
      %v164 = vld [vmem:[#allocation3 + $0x60] sm:$0xff]
      %v165 = vld [vmem:[#allocation3 + $0x68] sm:$0xff]
      %v166 = vld [vmem:[#allocation3 + $0x70] sm:$0xff]
      %v167 = vld [vmem:[#allocation3 + $0x78] sm:$0xff]
      %168 = vmatprep.subr.mxu0 0.0
      %169 = vmatpush1.msra.mxu0 %v152
      %170 = vmatprep.subr.mxu0 0.0
      %171 = vmatpush1.msra.mxu0 %v153
      %172 = vmatprep.subr.mxu0 0.0
      %173 = vmatpush1.msra.mxu0 %v154
      %174 = vmatprep.subr.mxu0 0.0
      %175 = vmatpush1.msra.mxu0 %v155
      %176 = vmatprep.subr.mxu0 0.0
      %177 = vmatpush1.msra.mxu0 %v156
      %178 = vmatprep.subr.mxu0 0.0
      %179 = vmatpush1.msra.mxu0 %v157
      %180 = vmatprep.subr.mxu0 0.0
      %181 = vmatpush1.msra.mxu0 %v158
      %182 = vmatprep.subr.mxu0 0.0
      %183 = vmatpush1.msra.mxu0 %v159
      %184 = vmatprep.subr.mxu0 0.0
      %185 = vmatpush1.msra.mxu0 %v160
      %186 = vmatprep.subr.mxu0 0.0
      %187 = vmatpush1.msra.mxu0 %v161
      %188 = vmatprep.subr.mxu0 0.0
      %189 = vmatpush1.msra.mxu0 %v162
      %190 = vmatprep.subr.mxu0 0.0
      %191 = vmatpush1.msra.mxu0 %v163
      %192 = vmatprep.subr.mxu0 0.0
      %193 = vmatpush1.msra.mxu0 %v164
      %194 = vmatprep.subr.mxu0 0.0
      %195 = vmatpush1.msra.mxu0 %v165
      %196 = vmatprep.subr.mxu0 0.0
      %197 = vmatpush1.msra.mxu0 %v166
      %198 = vmatprep.subr.mxu0 0.0
      %199 = vmatpush1.msra.mxu0 %v167
      %200 = vmatprep.subr.mxu0 0.0
      %201 = vmatpush1.msra.mxu0 0.0
      %202 = vmatprep.subr.mxu0 0.0
      %203 = vmatpush1.msra.mxu0 0.0
      %204 = vmatprep.subr.mxu0 0.0
      %205 = vmatpush1.msra.mxu0 0.0
      %206 = vmatprep.subr.mxu0 0.0
      %207 = vmatpush1.msra.mxu0 0.0
      %208 = vmatprep.subr.mxu0 0.0
      %209 = vmatpush1.msra.mxu0 0.0
      %210 = vmatprep.subr.mxu0 0.0
      %211 = vmatpush1.msra.mxu0 0.0
      %212 = vmatprep.subr.mxu0 0.0
      %213 = vmatpush1.msra.mxu0 0.0
      %214 = vmatprep.subr.mxu0 0.0
      %215 = vmatpush1.msra.mxu0 0.0
      %216 = vmatprep.subr.mxu0 0.0
      %217 = vmatpush1.msra.mxu0 0.0
      %218 = vmatprep.subr.mxu0 0.0
      %219 = vmatpush1.msra.mxu0 0.0
      %220 = vmatprep.subr.mxu0 0.0
      %221 = vmatpush1.msra.mxu0 0.0
      %222 = vmatprep.subr.mxu0 0.0
      %223 = vmatpush1.msra.mxu0 0.0
      %224 = vmatprep.subr.mxu0 0.0
      %225 = vmatpush1.msra.mxu0 0.0
      %226 = vmatprep.subr.mxu0 0.0
      %227 = vmatpush1.msra.mxu0 0.0
      %228 = vmatprep.subr.mxu0 0.0
      %229 = vmatpush1.msra.mxu0 0.0
      %230 = vmatprep.subr.mxu0 0.0
      %231 = vmatpush1.msra.mxu0 0.0
      %232 = vmatprep.mubr.f32.mxu0 0.0
      %233 = vmatmul.mubr.f32.gmra.mrb[0].mxu0 %v150
      %v234 = vpop.f32.mrb[0].mxu0
      %v235 = vadd.f32 0.0, %v234
      %v236 = vpop.f32.mrb[0].mxu0
      %237 = vmatprep.mubr.f32.mxu0 0.0
      %238 = vmatmul.mubr.f32.gmra.mrb[0].mxu0 %v151
      %v239 = vpop.f32.mrb[0].mxu0
      %v240 = vadd.f32 0.0, %v239
      %v241 = vpop.f32.mrb[0].mxu0
      %242 = vdwg.mxu0
      %v243 = vld [vmem:[#allocation2] sm:$0xff]
      %v244 = vld [vmem:[#allocation2 + $0x8] sm:$0xff]
      %v245 = vadd.f32 %v243, %v235
      %v246 = vadd.f32 %v244, %v240
      %247 = vst [vmem:[%s5] sm:$0xff] %v245
      %248 = vst [vmem:[%s5 + $0x8] sm:$0xff] %v246
    $region33: #{_head_lora_call.1} parent=1 // pred_fallthru
      _
    // Predicated region
    $region34: #{_head_lora_call.1} parent=1 // pred_check
      _
    $region35: #{_head_lora_call.1} parent=1 // pred_check_branch
      %250 = sbr.rel (0) target = $region37
    $region36: #{_head_lora_call.1} parent=1 // pred_region
      _
    $region37: #{_head_lora_call.1} parent=1 // pred_fallthru
      _
    // Predicated region
    $region38: #{_head_lora_call.1} parent=1 // pred_check
      _
    $region39: #{_head_lora_call.1} parent=1 // pred_check_branch
      %252 = sbr.rel (0) target = $region41
    $region40: #{_head_lora_call.1} parent=1 // pred_region
      _
    $region41: #{_head_lora_call.1} parent=1 // pred_fallthru
      _
    %253 = vsyncpa [#allocation4], 1

</llo_original>
